<compile_context>
chip_gen: v7x
topology: tpu7x:2x2x1
jax: 0.10.0
libtpu: 0.0.40
codegen_flags: <defaults>
</compile_context>

<pallas_src>
import functools

import jax
import jax.numpy as jnp
from jax.experimental import pallas as pl
from jax.experimental.pallas import tpu as pltpu

EPS = 1e-5
_LANE = 128


def _round_up(x, m):
    return ((x + m - 1) // m) * m


def _vmem_capacity_bytes():
    try:
        return int(pltpu.get_tpu_info().vmem_capacity_bytes)
    except Exception:
        return 64 << 20  # conservative fallback (v7x per-TensorCore VMEM)


# --------------------------------------------------------------- path A -----
# Whole reduction axis (M) of a feature slab resident in VMEM: exactly one
# HBM read + one HBM write per element.

def _norm_resident_kernel(x_ref, o_ref):
    x = x_ref[...].astype(jnp.float32)                       # (M, tn)
    inv_m = 1.0 / float(x.shape[0])
    mu = jnp.sum(x, axis=0, keepdims=True) * inv_m           # mean_1
    a = x - mu                                               # sub
    sigma = jnp.sum(a * a, axis=0, keepdims=True) * inv_m    # square + mean_2
    # add eps, sqrt, div -> fused as rsqrt (single EUP transcendental)
    o_ref[...] = (a * jax.lax.rsqrt(sigma + EPS)).astype(o_ref.dtype)


def _choose_resident_tn(M, N, budget_bytes):
    itemsize = 4
    bytes_per_col = 2 * 2 * M * itemsize      # (in + out) x double-buffer
    max_tn = (budget_bytes // bytes_per_col) // _LANE * _LANE
    if max_tn < _LANE:
        return None                            # full-M slab does not fit
    n128 = _round_up(N, _LANE)
    tn = min(max_tn, 2048, n128)
    # Give v7x's two TensorCores >= 2 parallel grid steps, but only shrink the
    # tile while each block stays >= 512 KiB (per-step overhead stays hidden);
    # tiny inputs (like the test shape) keep a single grid step.
    while (tn > _LANE and pl.cdiv(n128, tn) < 2
           and M * (tn - _LANE) * itemsize >= (512 << 10)):
        tn -= _LANE
    return tn


def _forward_resident(x, tn, vmem_limit):
    M, N = x.shape
    n_pad = _round_up(N, tn)
    xp = jnp.pad(x, ((0, 0), (0, n_pad - N))) if n_pad != N else x
    y = pl.pallas_call(
        _norm_resident_kernel,
        out_shape=jax.ShapeDtypeStruct((M, n_pad), x.dtype),
        grid_spec=pltpu.PrefetchScalarGridSpec(
            num_scalar_prefetch=0,
            grid=(n_pad // tn,),
            in_specs=[pl.BlockSpec((M, tn), lambda j: (0, j))],
            out_specs=pl.BlockSpec((M, tn), lambda j: (0, j)),
        ),
        compiler_params=pltpu.CompilerParams(
            dimension_semantics=("parallel",),
            vmem_limit_bytes=vmem_limit,
        ),
    )(xp)
    return y[:, :N] if n_pad != N else y


# --------------------------------------------------------------- path B -----
# Fallback for M too large to keep a full feature slab resident:
#   pass 1: accumulate per-column sum / sum-of-squares over M tiles,
#   pass 2: stream x again and apply (x - mu) * rsqrt(var + eps).

def _stats_kernel(x_ref, mu_ref, rstd_ref, s_ref, sq_ref, *, m_real):
    i = pl.program_id(1)          # reduction (M) axis, innermost

    @pl.when(i == 0)
    def _():
        s_ref[...] = jnp.zeros_like(s_ref)
        sq_ref[...] = jnp.zeros_like(sq_ref)

    x = x_ref[...].astype(jnp.float32)
    s_ref[...] += jnp.sum(x, axis=0, keepdims=True)
    sq_ref[...] += jnp.sum(x * x, axis=0, keepdims=True)

    @pl.when(i == pl.num_programs(1) - 1)
    def _():
        inv_m = 1.0 / float(m_real)
        mu = s_ref[...] * inv_m
        var = jnp.maximum(sq_ref[...] * inv_m - mu * mu, 0.0)
        mu_ref[...] = mu
        rstd_ref[...] = jax.lax.rsqrt(var + EPS)


def _apply_kernel(x_ref, mu_ref, rstd_ref, o_ref):
    a = x_ref[...].astype(jnp.float32) - mu_ref[...]
    o_ref[...] = (a * rstd_ref[...]).astype(o_ref.dtype)


def _forward_tiled(x, *, vmem_limit, budget_bytes, tm=None, tn=None):
    M, N = x.shape
    itemsize = 4
    if tn is None:
        tn = min(512, _round_up(N, _LANE))
    if tm is None:
        tm = budget_bytes // (2 * 2 * tn * itemsize)   # in + out, double-buffered
        tm = max(8, min((tm // 8) * 8, _round_up(M, 8), 4096))
    m_pad = _round_up(M, tm)
    n_pad = _round_up(N, tn)
    xp = x
    if (m_pad, n_pad) != (M, N):
        # Zero padding leaves per-column sum / sum-of-squares unchanged; the
        # true row count M is used as the divisor inside the stats kernel.
        xp = jnp.pad(x, ((0, m_pad - M), (0, n_pad - N)))
    num_n, num_m = n_pad // tn, m_pad // tm

    mu, rstd = pl.pallas_call(
        functools.partial(_stats_kernel, m_real=M),
        out_shape=(jax.ShapeDtypeStruct((1, n_pad), jnp.float32),
                   jax.ShapeDtypeStruct((1, n_pad), jnp.float32)),
        grid_spec=pltpu.PrefetchScalarGridSpec(
            num_scalar_prefetch=0,
            grid=(num_n, num_m),
            in_specs=[pl.BlockSpec((tm, tn), lambda j, i: (i, j))],
            out_specs=(pl.BlockSpec((1, tn), lambda j, i: (0, j)),
                       pl.BlockSpec((1, tn), lambda j, i: (0, j))),
            scratch_shapes=[pltpu.VMEM((1, tn), jnp.float32),
                            pltpu.VMEM((1, tn), jnp.float32)],
        ),
        compiler_params=pltpu.CompilerParams(
            dimension_semantics=("parallel", "arbitrary"),
            vmem_limit_bytes=vmem_limit,
        ),
    )(xp)

    y = pl.pallas_call(
        _apply_kernel,
        out_shape=jax.ShapeDtypeStruct((m_pad, n_pad), x.dtype),
        grid_spec=pltpu.PrefetchScalarGridSpec(
            num_scalar_prefetch=0,
            grid=(num_n, num_m),
            in_specs=[pl.BlockSpec((tm, tn), lambda j, i: (i, j)),
                      pl.BlockSpec((1, tn), lambda j, i: (0, j)),
                      pl.BlockSpec((1, tn), lambda j, i: (0, j))],
            out_specs=pl.BlockSpec((tm, tn), lambda j, i: (i, j)),
        ),
        compiler_params=pltpu.CompilerParams(
            dimension_semantics=("parallel", "parallel"),
            vmem_limit_bytes=vmem_limit,
        ),
    )(xp, mu, rstd)
    if (m_pad, n_pad) != (M, N):
        y = y[:M, :N]
    return y


# ------------------------------------------------------------- dispatch -----

def my_model_forward(x: jax.Array) -> jax.Array:
    """mu = mean(x,0); A = x-mu; sigma = mean(A^2,0); y = A/sqrt(sigma+1e-5)."""
    assert x.ndim == 2
    M, N = x.shape
    cap = _vmem_capacity_bytes()
    vmem_limit = int(min(cap * 3 // 4, 100 << 20))
    budget = cap // 2                      # bytes for pipelined in+out buffers
    tn = _choose_resident_tn(M, N, budget)
    if tn is not None:
        return _forward_resident(x, tn, vmem_limit)
    return _forward_tiled(x, vmem_limit=vmem_limit, budget_bytes=budget)


def _reference(x):
    mu = jnp.mean(x, axis=0, keepdims=True)
    a = x - mu
    sigma = jnp.mean(a * a, axis=0, keepdims=True)
    return a / jnp.sqrt(sigma + EPS)


if __name__ == "__main__":
    key = jax.random.PRNGKey(0)
    k0, k1 = jax.random.split(key)

    # Small deterministic input: 16 samples x 256 features (resident path).
    x = jax.random.normal(k0, (16, 256), dtype=jnp.float32) * 2.0 + 0.5
    y = jax.block_until_ready(my_model_forward(x))
    y_ref = _reference(x)
    assert y.shape == x.shape and y.dtype == x.dtype
    assert jnp.allclose(y, y_ref, atol=1e-5, rtol=1e-5), "resident path mismatch"

    # Also exercise the large-M fallback (two-pass tiled) path at a tiny shape.
    x2 = jax.random.normal(k1, (32, 384), dtype=jnp.float32) * 1.5 - 0.3
    y2 = jax.block_until_ready(
        _forward_tiled(x2, vmem_limit=32 << 20, budget_bytes=16 << 20, tm=8, tn=128))
    assert jnp.allclose(y2, _reference(x2), atol=1e-4, rtol=1e-4), "tiled path mismatch"

    print("KERNEL_OK")
</pallas_src>

<mosaic_0001>
module attributes {stable_mosaic.version = 11 : i64} {
  func.func @_norm_resident_kernel(%arg0: i32, %arg1: memref<16x256xf32, #tpu.memory_space<vmem>>, %arg2: memref<16x256xf32, #tpu.memory_space<vmem>>) attributes {dimension_semantics = [#tpu.dimension_semantics<parallel>], iteration_bounds = array<i64: 1>, scalar_prefetch = 0 : i64, scratch_operands = 0 : i64, tpu.core_type = #tpu.core_type<tc>, window_params = [{transform_indices = @transform_0, window_bounds = array<i64: 16, 256>}, {transform_indices = @transform_1, window_bounds = array<i64: 16, 256>}]} {
    %c0 = arith.constant 0 : index
    %c0_0 = arith.constant 0 : index
    %0 = vector.load %arg1[%c0, %c0_0] : memref<16x256xf32, #tpu.memory_space<vmem>>, vector<16x256xf32>
    %cst = arith.constant dense<0.000000e+00> : vector<256xf32>
    %1 = vector.multi_reduction <add>, %0, %cst [0] : vector<16x256xf32> to vector<256xf32>
    %2 = vector.shape_cast %1 : vector<256xf32> to vector<1x256xf32>
    %cst_1 = arith.constant 6.250000e-02 : f32
    %3 = vector.broadcast %cst_1 : f32 to vector<1x256xf32>
    %4 = arith.mulf %2, %3 : vector<1x256xf32>
    %5 = vector.broadcast %4 : vector<1x256xf32> to vector<16x256xf32>
    %6 = arith.subf %0, %5 : vector<16x256xf32>
    %7 = arith.mulf %6, %6 : vector<16x256xf32>
    %cst_2 = arith.constant dense<0.000000e+00> : vector<256xf32>
    %8 = vector.multi_reduction <add>, %7, %cst_2 [0] : vector<16x256xf32> to vector<256xf32>
    %9 = vector.shape_cast %8 : vector<256xf32> to vector<1x256xf32>
    %cst_3 = arith.constant 6.250000e-02 : f32
    %10 = vector.broadcast %cst_3 : f32 to vector<1x256xf32>
    %11 = arith.mulf %9, %10 : vector<1x256xf32>
    %cst_4 = arith.constant 9.99999974E-6 : f32
    %12 = vector.broadcast %cst_4 : f32 to vector<1x256xf32>
    %13 = arith.addf %11, %12 : vector<1x256xf32>
    %14 = math.rsqrt %13 : vector<1x256xf32>
    %15 = vector.broadcast %14 : vector<1x256xf32> to vector<16x256xf32>
    %16 = arith.mulf %6, %15 : vector<16x256xf32>
    %c0_5 = arith.constant 0 : index
    %c0_6 = arith.constant 0 : index
    %17 = vector.load %arg2[%c0_5, %c0_6] : memref<16x256xf32, #tpu.memory_space<vmem>>, vector<16x256xf32>
    tpu.vector_store %arg2[%c0_5, %c0_6], %16 {strides = array<i32>} : memref<16x256xf32, #tpu.memory_space<vmem>>, vector<16x256xf32>,
    return
  }
  func.func @transform_0(%arg0: i32) -> (i32, i32) {
    %c0_i32 = arith.constant 0 : i32
    %c0_i32_0 = arith.constant 0 : i32
    return %c0_i32, %arg0 : i32, i32
  }
  func.func @transform_1(%arg0: i32) -> (i32, i32) {
    %c0_i32 = arith.constant 0 : i32
    %c0_i32_0 = arith.constant 0 : i32
    return %c0_i32, %arg0 : i32, i32
  }
}

</mosaic_0001>

<llo_original>
// kernel: tpu_custom_call.1
$region0: #{tpu_custom_call.1}
  #allocation0 [shape = 'u32[]', space=smem, size = 0x4, offset = 0x4, fixed_abs, tag = 'smem constant byte address 0x4 - core index']
  #allocation1 [shape = 'u32[144,128]{1,0:T(1,128)}', space=vmem, size = 0x12000, scoped, tag = 'internal scratch']
  %s0 = inlined_call_operand.hbm [shape: f32[16,256], index: 0, kind: input, shape index: {}]
  %s1 = inlined_call_operand.hbm [shape: f32[16,256], index: 1, kind: output, shape index: {}]
  %s2 = sld [smem:[#allocation0]]
  $region18: #{tpu_custom_call.1} parent=0
    _
  %s4 = ssub.s32 1, %s2
  %s5 = scalar_select 0, %s4, %s2
  $region1: #{tpu_custom_call.1} parent=0
    #allocation2 [shape = 'u8[16384]{0}', space=vmem, size = 0x4000, scoped, tag = 'input window, operand 0, single buffered']
    #allocation3 [shape = 's32[1]{0}', space=sflag, size = 0x4, scoped, tag = 'scoped memory for tpu_custom_call.1']
    #allocation4 [shape = 's32[1]{0}', space=sflag, size = 0x4, scoped, tag = 'scoped memory for tpu_custom_call.1']
    #allocation5 [shape = 'u8[16384]{0}', space=vmem, size = 0x4000, scoped, tag = 'output window, operand 0, single buffered']
    %6 = vsyncpa [#allocation3], 0
    %7 = vsyncpa [#allocation4], 0
    // Predicated region
    $region2: #{tpu_custom_call.1} parent=1 // pred_check
      _
    $region3: #{tpu_custom_call.1} parent=1 // pred_check_branch
      %9 = sbr.rel (0) target = $region5
    $region4: #{tpu_custom_call.1} parent=1 // pred_region
      %s11 = ssub.s32 512, 512
      %12 = vsyncadd [#allocation3], %s11
      %s13 = sshll.u32 [#allocation2], 4
      %s14 = int_to_ptr.vmem [resolvable:$true] %s13
      %19 = dma.hbm_to_vmem [thread:$0]  %s0, 512, %s14, [#allocation3], 256, 256, 16
    $region5: #{tpu_custom_call.1} parent=1 // pred_fallthru
      _
    // Predicated region
    $region6: #{tpu_custom_call.1} parent=1 // pred_check
      _
    $region7: #{tpu_custom_call.1} parent=1 // pred_check_branch
      %21 = sbr.rel (0) target = $region9
    $region8: #{tpu_custom_call.1} parent=1 // pred_region
      %22 = dma.done [#allocation3], 512
    $region9: #{tpu_custom_call.1} parent=1 // pred_fallthru
      _
    %v23 = vld [vmem:[#allocation2] sm:$0xff]
    %v24 = vld [vmem:[#allocation2 + $0x8] sm:$0xff]
    %v25 = vld [vmem:[#allocation2 + $0x10] sm:$0xff]
    %v26 = vld [vmem:[#allocation2 + $0x18] sm:$0xff]
    %v27 = vadd.f32 %v23, %v25
    %v28 = vrot.slane %v27, 4
    %v29 = vadd.f32 %v27, %v28
    %v30 = vrot.slane %v29, 2
    %v31 = vadd.f32 %v29, %v30
    %v32 = vrot.slane %v31, 1
    %v33 = vadd.f32 %v31, %v32
    %v34 = vadd.f32 %v24, %v26
    %v35 = vrot.slane %v34, 4
    %v36 = vadd.f32 %v34, %v35
    %v37 = vrot.slane %v36, 2
    %v38 = vadd.f32 %v36, %v37
    %v39 = vrot.slane %v38, 1
    %v40 = vadd.f32 %v38, %v39
    %v41 = vmul.f32 %v33, 0.0625
    %v42 = vmul.f32 %v40, 0.0625
    %v43 = vsub.f32 %v23, %v41
    %v44 = vsub.f32 %v24, %v42
    %v45 = vsub.f32 %v25, %v41
    %v46 = vsub.f32 %v26, %v42
    %v47 = vmul.f32 %v43, %v43
    %v48 = vmul.f32 %v44, %v44
    %v49 = vmul.f32 %v45, %v45
    %v50 = vmul.f32 %v46, %v46
    %v51 = vadd.f32 %v47, %v49
    %v52 = vrot.slane %v51, 4
    %v53 = vadd.f32 %v51, %v52
    %v54 = vrot.slane %v53, 2
    %v55 = vadd.f32 %v53, %v54
    %v56 = vrot.slane %v55, 1
    %v57 = vadd.f32 %v55, %v56
    %v58 = vadd.f32 %v48, %v50
    %v59 = vrot.slane %v58, 4
    %v60 = vadd.f32 %v58, %v59
    %v61 = vrot.slane %v60, 2
    %v62 = vadd.f32 %v60, %v61
    %v63 = vrot.slane %v62, 1
    %v64 = vadd.f32 %v62, %v63
    %v65 = vmul.f32 %v57, 0.0625
    %v66 = vmul.f32 %v64, 0.0625
    %v67 = vadd.f32 %v65, 1e-05
    %v68 = vadd.f32 %v66, 1e-05
    %v69 = vrsqrt.pop %v67
    %v70 = vrsqrt.pop %v68
    %v71 = vmul.f32 %v43, %v69
    %v72 = vmul.f32 %v44, %v70
    %v73 = vmul.f32 %v45, %v69
    %v74 = vmul.f32 %v46, %v70
    %75 = vst [vmem:[#allocation5] sm:$0xff] %v71
    %76 = vst [vmem:[#allocation5 + $0x8] sm:$0xff] %v72
    %77 = vst [vmem:[#allocation5 + $0x10] sm:$0xff] %v73
    %78 = vst [vmem:[#allocation5 + $0x18] sm:$0xff] %v74
    // Predicated region
    $region10: #{tpu_custom_call.1} parent=1 // pred_check
      _
    $region11: #{tpu_custom_call.1} parent=1 // pred_check_branch
      %80 = sbr.rel (0) target = $region13
    $region12: #{tpu_custom_call.1} parent=1 // pred_region
      %s82 = ssub.s32 512, 512
      %83 = vsyncadd [#allocation4], %s82
      %s84 = sshll.u32 [#allocation5], 4
      %s85 = int_to_ptr.vmem [resolvable:$true] %s84
      %90 = dma.vmem_to_hbm [thread:$0]  %s85, 512, %s1, [#allocation4], 256, 256, 16
    $region13: #{tpu_custom_call.1} parent=1 // pred_fallthru
      _
    // Predicated region
    $region14: #{tpu_custom_call.1} parent=1 // pred_check
      _
    $region15: #{tpu_custom_call.1} parent=1 // pred_check_branch
      %92 = sbr.rel (0) target = $region17
    $region16: #{tpu_custom_call.1} parent=1 // pred_region
      %93 = dma.done [#allocation4], 512
    $region17: #{tpu_custom_call.1} parent=1 // pred_fallthru
      _
    %94 = vsyncpa [#allocation3], 1
    %95 = vsyncpa [#allocation4], 1

</llo_original>
